<compile_context>
chip_gen: v7x
topology: tpu7x:2x2x1
jax: 0.10.0
libtpu: 0.0.40
codegen_flags: <defaults>
</compile_context>

<pallas_src>
import functools

import jax
import jax.numpy as jnp
from jax.experimental import pallas as pl
from jax.experimental.pallas import tpu as pltpu


def _round_up(x, m):
    return ((x + m - 1) // m) * m


def _choose_tiles(B, T):
    """Pick (batch-tile BB, time-tile TT, grid dims nB, nT)."""
    ROW_CAP = 2048   # output rows per grid step (review: 1024-2048 amortizes step overhead)
    BB_CAP = 32      # bounds the statically-unrolled in-kernel im2col loop (BB*K slices)

    if T <= ROW_CAP:
        TT, nT = T, 1                      # full time per block -> no ragged output tile
    else:
        TT = ROW_CAP                       # multiple of 8; last tile may be ragged (masked)
        nT = -(-T // TT)

    bb_max = max(1, min(B, BB_CAP, ROW_CAP // max(TT, 1)))
    BB = 1
    for d in range(bb_max, 0, -1):         # largest divisor of B within the row budget
        if B % d == 0:
            BB = d
            break
    nB = B // BB

    # v7x: prefer an even total step count so the ("parallel","parallel") grid
    # shards evenly across the two TensorCores (v5e/v6e: single TC, no effect).
    total = nB * nT
    if total > 1 and total % 2 == 1:
        for d in range(BB - 1, 0, -1):
            if B % d == 0 and ((B // d) * nT) % 2 == 0:
                BB, nB = d, B // d
                break
    return BB, TT, nB, nT


def _make_kernel(BB, TT, K, C, A, KCP):
    """Kernel: in-VMEM im2col assembly + one fused MXU dot per batch row-block."""
    KC = K * C

    def kernel(xt_ref, wf_ref, o_ref, col_ref):
        # xt_ref:  (BB, T_in, C)  per-batch 'same'-padded input, resident across time tiles
        # wf_ref:  (KCP, A)       fused conv+dense weight (zero-padded rows KC..KCP)
        # o_ref:   (BB, TT, A)    output tile (lane-dense when A % 128 == 0)
        # col_ref: (TT, KCP)      VMEM scratch for the im2col block (reused per batch row)
        tj = pl.program_id(1)
        t0 = tj * TT
        if TT % 8 == 0:
            t0 = pl.multiple_of(t0, 8)

        # Zero the padded contraction columns (uninitialized VMEM could hold
        # NaNs; the matching fused-weight rows are zero, so any finite value
        # would do, but NaN*0 != 0).
        if KCP > KC:
            col_ref[:, KC:KCP] = jnp.zeros((TT, KCP - KC), col_ref.dtype)

        for bb in range(BB):                                   # static unroll
            for k in range(K):                                 # static unroll
                col_ref[:, k * C:(k + 1) * C] = xt_ref[bb, pl.ds(t0 + k, TT), :]
            y = jnp.dot(col_ref[...], wf_ref[...],
                        preferred_element_type=jnp.float32)    # (TT, A), f32 accum
            o_ref[bb] = y.astype(o_ref.dtype)

    return kernel


def _xla_forward(x, w_conv, w_dense, pad, compute_dtype, out_dtype):
    """Small-problem fallback: plain XLA conv + dense (same math, same dtypes)."""
    y = jax.lax.conv_general_dilated(
        x.astype(compute_dtype), w_conv.astype(compute_dtype),
        window_strides=(1,), padding=[(pad, pad)],
        dimension_numbers=("NCH", "OIH", "NCH"),
        preferred_element_type=jnp.float32)                    # [B, F, T]
    y = jnp.transpose(y, (0, 2, 1)).astype(compute_dtype)      # [B, T, F]
    out = jnp.dot(y, w_dense.T.astype(compute_dtype),
                  preferred_element_type=jnp.float32)          # [B, T, A]
    return out.astype(out_dtype)


def location_layer(attention_weights_cat, w_conv, w_dense, *,
                   compute_dtype=jnp.bfloat16, out_dtype=None,
                   use_pallas=None, min_pallas_rows=1024):
    """attention_weights_cat: [B, 2, T]  (NCW, like PyTorch)
       w_conv:  [F, 2, K]   (PyTorch Conv1d weight layout)
       w_dense: [A, F]      (PyTorch Linear weight layout)
       compute_dtype: operand dtype for the fused matmul (default bf16;
                      accumulation is always f32 on the MXU).
       out_dtype: output dtype (default: input dtype).
       use_pallas: None -> auto-dispatch (XLA path below `min_pallas_rows`
                   output rows, Pallas above); True/False forces a path.
       returns: [B, T, A]
    """
    B, C, T = attention_weights_cat.shape
    F_, C2, K = w_conv.shape
    assert C2 == C
    # Even K would change the output length under PyTorch's pad=(K-1)//2.
    assert K % 2 == 1, "LocationLayer kernel requires an odd attention_kernel_size"
    A = w_dense.shape[0]
    pad = (K - 1) // 2
    if out_dtype is None:
        out_dtype = attention_weights_cat.dtype

    if use_pallas is None:
        use_pallas = (B * T) >= min_pallas_rows
    if not use_pallas:
        return _xla_forward(attention_weights_cat, w_conv, w_dense,
                            pad, compute_dtype, out_dtype)

    BB, TT, nB, nT = _choose_tiles(B, T)
    KC = K * C
    KCP = max(8, _round_up(KC, 8))   # contraction dim padded to a clean sublane multiple

    # Fused weight: Wf[k*C + c, a] = sum_f conv[f, c, k] * dense[a, f]   (tiny)
    wf = jnp.einsum('fck,af->kca',
                    w_conv.astype(jnp.float32), w_dense.astype(jnp.float32))
    wf = wf.reshape(KC, A)
    wf = jnp.pad(wf, ((0, KCP - KC), (0, 0))).astype(compute_dtype)      # [KCP, A]

    # Per-batch 'same'-padded input (tap k never reads a neighbouring batch).
    # Cast to the compute dtype BEFORE padding so no f32 slab is built.
    x = jnp.transpose(attention_weights_cat.astype(compute_dtype), (0, 2, 1))  # [B, T, C]
    T_in = nT * TT + 2 * pad   # covers every in-kernel pl.ds window, incl. a ragged tail
    xt = jnp.pad(x, ((0, 0), (pad, T_in - T - pad), (0, 0)))                   # [B, T_in, C]

    kernel = _make_kernel(BB, TT, K, C, A, KCP)

    # VMEM per step: input block BB*T_in*C + weight KCP*A + output BB*TT*A
    # (double-buffered) + (TT, KCP) scratch -- a few MiB at most, well under
    # the scoped-VMEM default on v5e/v6e/v7x, so no vmem_limit_bytes needed.
    out = pl.pallas_call(
        kernel,
        out_shape=jax.ShapeDtypeStruct((B, T, A), out_dtype),
        grid=(nB, nT),
        in_specs=[
            pl.BlockSpec((BB, T_in, C), lambda bi, tj: (bi, 0, 0)),  # resident per batch-block
            pl.BlockSpec((KCP, A), lambda bi, tj: (0, 0)),           # resident fused weight
        ],
        out_specs=pl.BlockSpec((BB, TT, A), lambda bi, tj: (bi, tj, 0)),
        scratch_shapes=[pltpu.VMEM((TT, KCP), compute_dtype)],
        compiler_params=pltpu.CompilerParams(
            dimension_semantics=("parallel", "parallel")),
    )(xt, wf)
    return out


def location_layer_ref(attention_weights_cat, w_conv, w_dense):
    """Pure-JAX f32 reference mirroring the PyTorch forward."""
    pad = (w_conv.shape[-1] - 1) // 2
    y = jax.lax.conv_general_dilated(
        attention_weights_cat, w_conv,
        window_strides=(1,), padding=[(pad, pad)],
        dimension_numbers=("NCH", "OIH", "NCH"))               # [B, F, T]
    y = jnp.transpose(y, (0, 2, 1))                            # [B, T, F]
    return y @ w_dense.T                                       # [B, T, A]


if __name__ == "__main__":
    # Small shapes consistent with the module; attention_dim=128 matches the
    # real Tacotron2 config and keeps the output lane-dense.
    B, T = 2, 64
    attention_n_filters = 16
    attention_kernel_size = 5
    attention_dim = 128

    key = jax.random.PRNGKey(0)
    k1, k2, k3 = jax.random.split(key, 3)

    w_conv = jax.random.normal(
        k1, (attention_n_filters, 2, attention_kernel_size), dtype=jnp.float32
    ) * (1.0 / (2 * attention_kernel_size) ** 0.5)
    w_dense = jax.random.normal(
        k2, (attention_dim, attention_n_filters), dtype=jnp.float32
    ) * (1.0 / attention_n_filters ** 0.5)
    attention_weights_cat = jax.random.normal(k3, (B, 2, T), dtype=jnp.float32)

    ref = location_layer_ref(attention_weights_cat, w_conv, w_dense)

    # 1) f32 compute path, Pallas forced: tight check against the XLA reference.
    out_f32 = jax.block_until_ready(
        location_layer(attention_weights_cat, w_conv, w_dense,
                       compute_dtype=jnp.float32, use_pallas=True))
    assert out_f32.shape == (B, T, attention_dim)
    assert jnp.allclose(out_f32, ref, atol=1e-4, rtol=1e-4), float(
        jnp.max(jnp.abs(out_f32 - ref)))

    # 2) default bf16 compute path (f32 accumulation), Pallas forced: compare
    #    against a reference built from bf16-quantized operands.
    out_bf16 = jax.block_until_ready(
        location_layer(attention_weights_cat, w_conv, w_dense, use_pallas=True))
    xq = attention_weights_cat.astype(jnp.bfloat16).astype(jnp.float32)
    wcq = w_conv.astype(jnp.bfloat16).astype(jnp.float32)
    wdq = w_dense.astype(jnp.bfloat16).astype(jnp.float32)
    ref_q = location_layer_ref(xq, wcq, wdq)
    err = float(jnp.max(jnp.abs(out_bf16.astype(jnp.float32) - ref_q)))
    assert err < 3e-2, err

    # 3) auto-dispatch path (B*T=128 < 1024 -> plain XLA, same math/dtypes).
    out_auto = jax.block_until_ready(
        location_layer(attention_weights_cat, w_conv, w_dense))
    err_auto = float(jnp.max(jnp.abs(out_auto.astype(jnp.float32) - ref_q)))
    assert err_auto < 3e-2, err_auto

    print("KERNEL_OK")
</pallas_src>

<mosaic_0001>
module attributes {stable_mosaic.version = 11 : i64} {
  func.func @kernel(%arg0: i32, %arg1: i32, %arg2: memref<2x68x2xf32, #tpu.memory_space<vmem>>, %arg3: memref<16x128xf32, #tpu.memory_space<vmem>>, %arg4: memref<2x64x128xf32, #tpu.memory_space<vmem>>, %arg5: memref<64x16xf32, #tpu.memory_space<vmem>>) attributes {dimension_semantics = [#tpu.dimension_semantics<parallel>, #tpu.dimension_semantics<parallel>], iteration_bounds = array<i64: 1, 1>, scalar_prefetch = 0 : i64, scratch_operands = 1 : i64, tpu.core_type = #tpu.core_type<tc>, window_params = [{transform_indices = @transform_0, window_bounds = array<i64: 2, 68, 2>}, {pipeline_mode = #tpu.pipeline_mode<synchronous>, transform_indices = @transform_1, window_bounds = array<i64: 16, 128>}, {transform_indices = @transform_2, window_bounds = array<i64: 2, 64, 128>}]} {
    %c64_i32 = arith.constant 64 : i32
    %0 = arith.muli %arg1, %c64_i32 : i32
    %1 = tpu.assume_multiple %0, 8 : i32
    %cst = arith.constant 0.000000e+00 : f32
    %2 = vector.broadcast %cst : f32 to vector<64x6xf32>
    %c0 = arith.constant 0 : index
    %c10 = arith.constant 10 : index
    %3 = vector.load %arg5[%c0, %c10] : memref<64x16xf32, #tpu.memory_space<vmem>>, vector<64x6xf32>
    tpu.vector_store %arg5[%c0, %c10], %2 {strides = array<i32>} : memref<64x16xf32, #tpu.memory_space<vmem>>, vector<64x6xf32>,
    %c0_i32 = arith.constant 0 : i32
    %4 = arith.addi %1, %c0_i32 : i32
    %c0_0 = arith.constant 0 : index
    %5 = arith.index_cast %4 : i32 to index
    %c0_1 = arith.constant 0 : index
    %6 = vector.load %arg2[%c0_0, %5, %c0_1] : memref<2x68x2xf32, #tpu.memory_space<vmem>>, vector<1x64x2xf32>
    %7 = vector.shape_cast %6 : vector<1x64x2xf32> to vector<64x2xf32>
    %c0_2 = arith.constant 0 : index
    %c0_3 = arith.constant 0 : index
    %8 = vector.load %arg5[%c0_2, %c0_3] : memref<64x16xf32, #tpu.memory_space<vmem>>, vector<64x2xf32>
    tpu.vector_store %arg5[%c0_2, %c0_3], %7 {strides = array<i32>} : memref<64x16xf32, #tpu.memory_space<vmem>>, vector<64x2xf32>,
    %c1_i32 = arith.constant 1 : i32
    %9 = arith.addi %1, %c1_i32 : i32
    %c0_4 = arith.constant 0 : index
    %10 = arith.index_cast %9 : i32 to index
    %c0_5 = arith.constant 0 : index
    %11 = vector.load %arg2[%c0_4, %10, %c0_5] : memref<2x68x2xf32, #tpu.memory_space<vmem>>, vector<1x64x2xf32>
    %12 = vector.shape_cast %11 : vector<1x64x2xf32> to vector<64x2xf32>
    %c0_6 = arith.constant 0 : index
    %c2 = arith.constant 2 : index
    %13 = vector.load %arg5[%c0_6, %c2] : memref<64x16xf32, #tpu.memory_space<vmem>>, vector<64x2xf32>
    tpu.vector_store %arg5[%c0_6, %c2], %12 {strides = array<i32>} : memref<64x16xf32, #tpu.memory_space<vmem>>, vector<64x2xf32>,
    %c2_i32 = arith.constant 2 : i32
    %14 = arith.addi %1, %c2_i32 : i32
    %c0_7 = arith.constant 0 : index
    %15 = arith.index_cast %14 : i32 to index
    %c0_8 = arith.constant 0 : index
    %16 = vector.load %arg2[%c0_7, %15, %c0_8] : memref<2x68x2xf32, #tpu.memory_space<vmem>>, vector<1x64x2xf32>
    %17 = vector.shape_cast %16 : vector<1x64x2xf32> to vector<64x2xf32>
    %c0_9 = arith.constant 0 : index
    %c4 = arith.constant 4 : index
    %18 = vector.load %arg5[%c0_9, %c4] : memref<64x16xf32, #tpu.memory_space<vmem>>, vector<64x2xf32>
    tpu.vector_store %arg5[%c0_9, %c4], %17 {strides = array<i32>} : memref<64x16xf32, #tpu.memory_space<vmem>>, vector<64x2xf32>,
    %c3_i32 = arith.constant 3 : i32
    %19 = arith.addi %1, %c3_i32 : i32
    %c0_10 = arith.constant 0 : index
    %20 = arith.index_cast %19 : i32 to index
    %c0_11 = arith.constant 0 : index
    %21 = vector.load %arg2[%c0_10, %20, %c0_11] : memref<2x68x2xf32, #tpu.memory_space<vmem>>, vector<1x64x2xf32>
    %22 = vector.shape_cast %21 : vector<1x64x2xf32> to vector<64x2xf32>
    %c0_12 = arith.constant 0 : index
    %c6 = arith.constant 6 : index
    %23 = vector.load %arg5[%c0_12, %c6] : memref<64x16xf32, #tpu.memory_space<vmem>>, vector<64x2xf32>
    tpu.vector_store %arg5[%c0_12, %c6], %22 {strides = array<i32>} : memref<64x16xf32, #tpu.memory_space<vmem>>, vector<64x2xf32>,
    %c4_i32 = arith.constant 4 : i32
    %24 = arith.addi %1, %c4_i32 : i32
    %c0_13 = arith.constant 0 : index
    %25 = arith.index_cast %24 : i32 to index
    %c0_14 = arith.constant 0 : index
    %26 = vector.load %arg2[%c0_13, %25, %c0_14] : memref<2x68x2xf32, #tpu.memory_space<vmem>>, vector<1x64x2xf32>
    %27 = vector.shape_cast %26 : vector<1x64x2xf32> to vector<64x2xf32>
    %c0_15 = arith.constant 0 : index
    %c8 = arith.constant 8 : index
    %28 = vector.load %arg5[%c0_15, %c8] : memref<64x16xf32, #tpu.memory_space<vmem>>, vector<64x2xf32>
    tpu.vector_store %arg5[%c0_15, %c8], %27 {strides = array<i32>} : memref<64x16xf32, #tpu.memory_space<vmem>>, vector<64x2xf32>,
    %c0_16 = arith.constant 0 : index
    %c0_17 = arith.constant 0 : index
    %29 = vector.load %arg5[%c0_16, %c0_17] : memref<64x16xf32, #tpu.memory_space<vmem>>, vector<64x16xf32>
    %c0_18 = arith.constant 0 : index
    %c0_19 = arith.constant 0 : index
    %30 = vector.load %arg3[%c0_18, %c0_19] : memref<16x128xf32, #tpu.memory_space<vmem>>, vector<16x128xf32>
    %cst_20 = arith.constant dense<0.000000e+00> : vector<64x128xf32>
    %31 = tpu.matmul %29, %30, %cst_20 {dimension_numbers = #tpu.dot_dimension_numbers<[1], [0], [0], [1], [0, 0, 1, 1], [], []>} : vector<64x16xf32>, vector<16x128xf32>, vector<64x128xf32> -> vector<64x128xf32>
    %c0_21 = arith.constant 0 : index
    %c0_22 = arith.constant 0 : index
    %c0_23 = arith.constant 0 : index
    %32 = vector.load %arg4[%c0_21, %c0_22, %c0_23] : memref<2x64x128xf32, #tpu.memory_space<vmem>>, vector<1x64x128xf32>
    %33 = vector.shape_cast %32 : vector<1x64x128xf32> to vector<64x128xf32>
    %34 = vector.shape_cast %31 : vector<64x128xf32> to vector<1x64x128xf32>
    tpu.vector_store %arg4[%c0_21, %c0_22, %c0_23], %34 {strides = array<i32>} : memref<2x64x128xf32, #tpu.memory_space<vmem>>, vector<1x64x128xf32>,
    %c0_i32_24 = arith.constant 0 : i32
    %35 = arith.addi %1, %c0_i32_24 : i32
    %c1 = arith.constant 1 : index
    %36 = arith.index_cast %35 : i32 to index
    %c0_25 = arith.constant 0 : index
    %37 = vector.load %arg2[%c1, %36, %c0_25] : memref<2x68x2xf32, #tpu.memory_space<vmem>>, vector<1x64x2xf32>
    %38 = vector.shape_cast %37 : vector<1x64x2xf32> to vector<64x2xf32>
    %c0_26 = arith.constant 0 : index
    %c0_27 = arith.constant 0 : index
    %39 = vector.load %arg5[%c0_26, %c0_27] : memref<64x16xf32, #tpu.memory_space<vmem>>, vector<64x2xf32>
    tpu.vector_store %arg5[%c0_26, %c0_27], %38 {strides = array<i32>} : memref<64x16xf32, #tpu.memory_space<vmem>>, vector<64x2xf32>,
    %c1_i32_28 = arith.constant 1 : i32
    %40 = arith.addi %1, %c1_i32_28 : i32
    %c1_29 = arith.constant 1 : index
    %41 = arith.index_cast %40 : i32 to index
    %c0_30 = arith.constant 0 : index
    %42 = vector.load %arg2[%c1_29, %41, %c0_30] : memref<2x68x2xf32, #tpu.memory_space<vmem>>, vector<1x64x2xf32>
    %43 = vector.shape_cast %42 : vector<1x64x2xf32> to vector<64x2xf32>
    %c0_31 = arith.constant 0 : index
    %c2_32 = arith.constant 2 : index
    %44 = vector.load %arg5[%c0_31, %c2_32] : memref<64x16xf32, #tpu.memory_space<vmem>>, vector<64x2xf32>
    tpu.vector_store %arg5[%c0_31, %c2_32], %43 {strides = array<i32>} : memref<64x16xf32, #tpu.memory_space<vmem>>, vector<64x2xf32>,
    %c2_i32_33 = arith.constant 2 : i32
    %45 = arith.addi %1, %c2_i32_33 : i32
    %c1_34 = arith.constant 1 : index
    %46 = arith.index_cast %45 : i32 to index
    %c0_35 = arith.constant 0 : index
    %47 = vector.load %arg2[%c1_34, %46, %c0_35] : memref<2x68x2xf32, #tpu.memory_space<vmem>>, vector<1x64x2xf32>
    %48 = vector.shape_cast %47 : vector<1x64x2xf32> to vector<64x2xf32>
    %c0_36 = arith.constant 0 : index
    %c4_37 = arith.constant 4 : index
    %49 = vector.load %arg5[%c0_36, %c4_37] : memref<64x16xf32, #tpu.memory_space<vmem>>, vector<64x2xf32>
    tpu.vector_store %arg5[%c0_36, %c4_37], %48 {strides = array<i32>} : memref<64x16xf32, #tpu.memory_space<vmem>>, vector<64x2xf32>,
    %c3_i32_38 = arith.constant 3 : i32
    %50 = arith.addi %1, %c3_i32_38 : i32
    %c1_39 = arith.constant 1 : index
    %51 = arith.index_cast %50 : i32 to index
    %c0_40 = arith.constant 0 : index
    %52 = vector.load %arg2[%c1_39, %51, %c0_40] : memref<2x68x2xf32, #tpu.memory_space<vmem>>, vector<1x64x2xf32>
    %53 = vector.shape_cast %52 : vector<1x64x2xf32> to vector<64x2xf32>
    %c0_41 = arith.constant 0 : index
    %c6_42 = arith.constant 6 : index
    %54 = vector.load %arg5[%c0_41, %c6_42] : memref<64x16xf32, #tpu.memory_space<vmem>>, vector<64x2xf32>
    tpu.vector_store %arg5[%c0_41, %c6_42], %53 {strides = array<i32>} : memref<64x16xf32, #tpu.memory_space<vmem>>, vector<64x2xf32>,
    %c4_i32_43 = arith.constant 4 : i32
    %55 = arith.addi %1, %c4_i32_43 : i32
    %c1_44 = arith.constant 1 : index
    %56 = arith.index_cast %55 : i32 to index
    %c0_45 = arith.constant 0 : index
    %57 = vector.load %arg2[%c1_44, %56, %c0_45] : memref<2x68x2xf32, #tpu.memory_space<vmem>>, vector<1x64x2xf32>
    %58 = vector.shape_cast %57 : vector<1x64x2xf32> to vector<64x2xf32>
    %c0_46 = arith.constant 0 : index
    %c8_47 = arith.constant 8 : index
    %59 = vector.load %arg5[%c0_46, %c8_47] : memref<64x16xf32, #tpu.memory_space<vmem>>, vector<64x2xf32>
    tpu.vector_store %arg5[%c0_46, %c8_47], %58 {strides = array<i32>} : memref<64x16xf32, #tpu.memory_space<vmem>>, vector<64x2xf32>,
    %c0_48 = arith.constant 0 : index
    %c0_49 = arith.constant 0 : index
    %60 = vector.load %arg5[%c0_48, %c0_49] : memref<64x16xf32, #tpu.memory_space<vmem>>, vector<64x16xf32>
    %c0_50 = arith.constant 0 : index
    %c0_51 = arith.constant 0 : index
    %61 = vector.load %arg3[%c0_50, %c0_51] : memref<16x128xf32, #tpu.memory_space<vmem>>, vector<16x128xf32>
    %cst_52 = arith.constant dense<0.000000e+00> : vector<64x128xf32>
    %62 = tpu.matmul %60, %61, %cst_52 {dimension_numbers = #tpu.dot_dimension_numbers<[1], [0], [0], [1], [0, 0, 1, 1], [], []>} : vector<64x16xf32>, vector<16x128xf32>, vector<64x128xf32> -> vector<64x128xf32>
    %c1_53 = arith.constant 1 : index
    %c0_54 = arith.constant 0 : index
    %c0_55 = arith.constant 0 : index
    %63 = vector.load %arg4[%c1_53, %c0_54, %c0_55] : memref<2x64x128xf32, #tpu.memory_space<vmem>>, vector<1x64x128xf32>
    %64 = vector.shape_cast %63 : vector<1x64x128xf32> to vector<64x128xf32>
    %65 = vector.shape_cast %62 : vector<64x128xf32> to vector<1x64x128xf32>
    tpu.vector_store %arg4[%c1_53, %c0_54, %c0_55], %65 {strides = array<i32>} : memref<2x64x128xf32, #tpu.memory_space<vmem>>, vector<1x64x128xf32>,
    return
  }
  func.func @transform_0(%arg0: i32, %arg1: i32) -> (i32, i32, i32) {
    %c0_i32 = arith.constant 0 : i32
    %c0_i32_0 = arith.constant 0 : i32
    %c0_i32_1 = arith.constant 0 : i32
    return %arg0, %c0_i32, %c0_i32_0 : i32, i32, i32
  }
  func.func @transform_1(%arg0: i32, %arg1: i32) -> (i32, i32) {
    %c0_i32 = arith.constant 0 : i32
    %c0_i32_0 = arith.constant 0 : i32
    %c0_i32_1 = arith.constant 0 : i32
    return %c0_i32, %c0_i32_0 : i32, i32
  }
  func.func @transform_2(%arg0: i32, %arg1: i32) -> (i32, i32, i32) {
    %c0_i32 = arith.constant 0 : i32
    %c0_i32_0 = arith.constant 0 : i32
    return %arg0, %arg1, %c0_i32 : i32, i32, i32
  }
}

</mosaic_0001>

<llo_original>
// kernel: tpu_custom_call.1
$region0: #{tpu_custom_call.1}
  #allocation0 [shape = 'u32[]', space=smem, size = 0x4, offset = 0x4, fixed_abs, tag = 'smem constant byte address 0x4 - core index']
  #allocation1 [shape = 'u32[144,128]{1,0:T(1,128)}', space=vmem, size = 0x12000, scoped, tag = 'internal scratch']
  #allocation2 [shape = 'f32[64,16]{1,0:T(8,128)}', space=vmem, size = 0x8000, scoped, tag = 'scratch operand']
  %s0 = inlined_call_operand.vmem [shape: f32[2,68,2], index: 0, kind: input, shape index: {}]
  %s1 = inlined_call_operand.vmem [shape: f32[16,128], index: 1, kind: input, shape index: {}]
  %s2 = inlined_call_operand.hbm [shape: f32[2,64,128], index: 2, kind: output, shape index: {}]
  %s3 = sld [smem:[#allocation0]]
  $region18: #{tpu_custom_call.1} parent=0
    _
  %s5 = ssub.s32 1, %s3
  %s6 = scalar_select 0, %s5, %s3
  $region1: #{tpu_custom_call.1} parent=0
    #allocation3 [shape = 'u8[65536]{0}', space=vmem, size = 0x10000, scoped, tag = 'output window, operand 0, single buffered']
    #allocation4 [shape = 's32[1]{0}', space=sflag, size = 0x4, scoped, tag = 'scoped memory for tpu_custom_call.1']
    %7 = vsyncpa [#allocation4], 0
    // Predicated region
    $region2: #{tpu_custom_call.1} parent=1 // pred_check
      _
    $region3: #{tpu_custom_call.1} parent=1 // pred_check_branch
      %9 = sbr.rel (0) target = $region5
    $region4: #{tpu_custom_call.1} parent=1 // pred_region
      _
    $region5: #{tpu_custom_call.1} parent=1 // pred_fallthru
      _
    // Predicated region
    $region6: #{tpu_custom_call.1} parent=1 // pred_check
      _
    $region7: #{tpu_custom_call.1} parent=1 // pred_check_branch
      %11 = sbr.rel (0) target = $region9
    $region8: #{tpu_custom_call.1} parent=1 // pred_region
      _
    $region9: #{tpu_custom_call.1} parent=1 // pred_fallthru
      _
    %s12 = smul.u32 0, 64
    %vm13 = vcmask 130128
    %14 = vst.msk [vmem:[#allocation2] sm:$0xff] %vm13, 0.0
    %15 = vst.msk [vmem:[#allocation2 + $0x8] sm:$0xff] %vm13, 0.0
    %16 = vst.msk [vmem:[#allocation2 + $0x10] sm:$0xff] %vm13, 0.0
    %17 = vst.msk [vmem:[#allocation2 + $0x18] sm:$0xff] %vm13, 0.0
    %18 = vst.msk [vmem:[#allocation2 + $0x20] sm:$0xff] %vm13, 0.0
    %19 = vst.msk [vmem:[#allocation2 + $0x28] sm:$0xff] %vm13, 0.0
    %20 = vst.msk [vmem:[#allocation2 + $0x30] sm:$0xff] %vm13, 0.0
    %21 = vst.msk [vmem:[#allocation2 + $0x38] sm:$0xff] %vm13, 0.0
    %s22 = scalar_lea.vmem %s0, %s12
    %v23 = vld [vmem:[%s22] sm:$0xff]
    %v24 = vld [vmem:[%s22 + $0x8] sm:$0xff]
    %v25 = vld [vmem:[%s22 + $0x10] sm:$0xff]
    %v26 = vld [vmem:[%s22 + $0x18] sm:$0xff]
    %v27 = vld [vmem:[%s22 + $0x20] sm:$0xff]
    %v28 = vld [vmem:[%s22 + $0x28] sm:$0xff]
    %v29 = vld [vmem:[%s22 + $0x30] sm:$0xff]
    %v30 = vld [vmem:[%s22 + $0x38] sm:$0xff]
    %vm31 = vcmask 15360
    %32 = vst.msk [vmem:[#allocation2] sm:$0xff] %vm31, %v23
    %33 = vst.msk [vmem:[#allocation2 + $0x8] sm:$0xff] %vm31, %v24
    %34 = vst.msk [vmem:[#allocation2 + $0x10] sm:$0xff] %vm31, %v25
    %35 = vst.msk [vmem:[#allocation2 + $0x18] sm:$0xff] %vm31, %v26
    %36 = vst.msk [vmem:[#allocation2 + $0x20] sm:$0xff] %vm31, %v27
    %37 = vst.msk [vmem:[#allocation2 + $0x28] sm:$0xff] %vm31, %v28
    %38 = vst.msk [vmem:[#allocation2 + $0x30] sm:$0xff] %vm31, %v29
    %39 = vst.msk [vmem:[#allocation2 + $0x38] sm:$0xff] %vm31, %v30
    %s40 = sadd.s32 %s12, 1
    %s41 = scalar_lea.vmem %s0, %s40
    %v42 = vld [vmem:[%s41] sm:$0xff]
    %v43 = vld [vmem:[%s41 + $0x8] sm:$0xff]
    %v44 = vld [vmem:[%s41 + $0x10] sm:$0xff]
    %v45 = vld [vmem:[%s41 + $0x18] sm:$0xff]
    %v46 = vld [vmem:[%s41 + $0x20] sm:$0xff]
    %v47 = vld [vmem:[%s41 + $0x28] sm:$0xff]
    %v48 = vld [vmem:[%s41 + $0x30] sm:$0xff]
    %v49 = vld [vmem:[%s41 + $0x38] sm:$0xff]
    %58 = vrot.lane.b32.xlu0 %v42, 2
    %v59 = vpop.permute.xlu0 %58
    %60 = vrot.lane.b32.xlu0 %v43, 2
    %v61 = vpop.permute.xlu0 %60
    %62 = vrot.lane.b32.xlu0 %v44, 2
    %v63 = vpop.permute.xlu0 %62
    %64 = vrot.lane.b32.xlu0 %v45, 2
    %v65 = vpop.permute.xlu0 %64
    %66 = vrot.lane.b32.xlu0 %v46, 2
    %v67 = vpop.permute.xlu0 %66
    %68 = vrot.lane.b32.xlu0 %v47, 2
    %v69 = vpop.permute.xlu0 %68
    %70 = vrot.lane.b32.xlu0 %v48, 2
    %v71 = vpop.permute.xlu0 %70
    %72 = vrot.lane.b32.xlu0 %v49, 2
    %v73 = vpop.permute.xlu0 %72
    %vm82 = vcmask 31760
    %83 = vst.msk [vmem:[#allocation2] sm:$0xff] %vm82, %v59
    %84 = vst.msk [vmem:[#allocation2 + $0x8] sm:$0xff] %vm82, %v61
    %85 = vst.msk [vmem:[#allocation2 + $0x10] sm:$0xff] %vm82, %v63
    %86 = vst.msk [vmem:[#allocation2 + $0x18] sm:$0xff] %vm82, %v65
    %87 = vst.msk [vmem:[#allocation2 + $0x20] sm:$0xff] %vm82, %v67
    %88 = vst.msk [vmem:[#allocation2 + $0x28] sm:$0xff] %vm82, %v69
    %89 = vst.msk [vmem:[#allocation2 + $0x30] sm:$0xff] %vm82, %v71
    %90 = vst.msk [vmem:[#allocation2 + $0x38] sm:$0xff] %vm82, %v73
    %s91 = sadd.s32 %s12, 2
    %s92 = scalar_lea.vmem %s0, %s91
    %v93 = vld [vmem:[%s92] sm:$0xff]
    %v94 = vld [vmem:[%s92 + $0x8] sm:$0xff]
    %v95 = vld [vmem:[%s92 + $0x10] sm:$0xff]
    %v96 = vld [vmem:[%s92 + $0x18] sm:$0xff]
    %v97 = vld [vmem:[%s92 + $0x20] sm:$0xff]
    %v98 = vld [vmem:[%s92 + $0x28] sm:$0xff]
    %v99 = vld [vmem:[%s92 + $0x30] sm:$0xff]
    %v100 = vld [vmem:[%s92 + $0x38] sm:$0xff]
    %109 = vrot.lane.b32.xlu0 %v93, 4
    %v110 = vpop.permute.xlu0 %109
    %111 = vrot.lane.b32.xlu0 %v94, 4
    %v112 = vpop.permute.xlu0 %111
    %113 = vrot.lane.b32.xlu0 %v95, 4
    %v114 = vpop.permute.xlu0 %113
    %115 = vrot.lane.b32.xlu0 %v96, 4
    %v116 = vpop.permute.xlu0 %115
    %117 = vrot.lane.b32.xlu0 %v97, 4
    %v118 = vpop.permute.xlu0 %117
    %119 = vrot.lane.b32.xlu0 %v98, 4
    %v120 = vpop.permute.xlu0 %119
    %121 = vrot.lane.b32.xlu0 %v99, 4
    %v122 = vpop.permute.xlu0 %121
    %123 = vrot.lane.b32.xlu0 %v100, 4
    %v124 = vpop.permute.xlu0 %123
    %vm133 = vcmask 48160
    %134 = vst.msk [vmem:[#allocation2] sm:$0xff] %vm133, %v110
    %135 = vst.msk [vmem:[#allocation2 + $0x8] sm:$0xff] %vm133, %v112
    %136 = vst.msk [vmem:[#allocation2 + $0x10] sm:$0xff] %vm133, %v114
    %137 = vst.msk [vmem:[#allocation2 + $0x18] sm:$0xff] %vm133, %v116
    %138 = vst.msk [vmem:[#allocation2 + $0x20] sm:$0xff] %vm133, %v118
    %139 = vst.msk [vmem:[#allocation2 + $0x28] sm:$0xff] %vm133, %v120
    %140 = vst.msk [vmem:[#allocation2 + $0x30] sm:$0xff] %vm133, %v122
    %141 = vst.msk [vmem:[#allocation2 + $0x38] sm:$0xff] %vm133, %v124
    %s142 = sadd.s32 %s12, 3
    %s143 = scalar_lea.vmem %s0, %s142
    %v144 = vld [vmem:[%s143] sm:$0xff]
    %v145 = vld [vmem:[%s143 + $0x8] sm:$0xff]
    %v146 = vld [vmem:[%s143 + $0x10] sm:$0xff]
    %v147 = vld [vmem:[%s143 + $0x18] sm:$0xff]
    %v148 = vld [vmem:[%s143 + $0x20] sm:$0xff]
    %v149 = vld [vmem:[%s143 + $0x28] sm:$0xff]
    %v150 = vld [vmem:[%s143 + $0x30] sm:$0xff]
    %v151 = vld [vmem:[%s143 + $0x38] sm:$0xff]
    %160 = vrot.lane.b32.xlu0 %v144, 6
    %v161 = vpop.permute.xlu0 %160
    %162 = vrot.lane.b32.xlu0 %v145, 6
    %v163 = vpop.permute.xlu0 %162
    %164 = vrot.lane.b32.xlu0 %v146, 6
    %v165 = vpop.permute.xlu0 %164
    %166 = vrot.lane.b32.xlu0 %v147, 6
    %v167 = vpop.permute.xlu0 %166
    %168 = vrot.lane.b32.xlu0 %v148, 6
    %v169 = vpop.permute.xlu0 %168
    %170 = vrot.lane.b32.xlu0 %v149, 6
    %v171 = vpop.permute.xlu0 %170
    %172 = vrot.lane.b32.xlu0 %v150, 6
    %v173 = vpop.permute.xlu0 %172
    %174 = vrot.lane.b32.xlu0 %v151, 6
    %v175 = vpop.permute.xlu0 %174
    %vm184 = vcmask 64560
    %185 = vst.msk [vmem:[#allocation2] sm:$0xff] %vm184, %v161
    %186 = vst.msk [vmem:[#allocation2 + $0x8] sm:$0xff] %vm184, %v163
    %187 = vst.msk [vmem:[#allocation2 + $0x10] sm:$0xff] %vm184, %v165
    %188 = vst.msk [vmem:[#allocation2 + $0x18] sm:$0xff] %vm184, %v167
    %189 = vst.msk [vmem:[#allocation2 + $0x20] sm:$0xff] %vm184, %v169
    %190 = vst.msk [vmem:[#allocation2 + $0x28] sm:$0xff] %vm184, %v171
    %191 = vst.msk [vmem:[#allocation2 + $0x30] sm:$0xff] %vm184, %v173
    %192 = vst.msk [vmem:[#allocation2 + $0x38] sm:$0xff] %vm184, %v175
    %s193 = sadd.s32 %s12, 4
    %s194 = scalar_lea.vmem %s0, %s193
    %v195 = vld [vmem:[%s194] sm:$0xff]
    %v196 = vld [vmem:[%s194 + $0x8] sm:$0xff]
    %v197 = vld [vmem:[%s194 + $0x10] sm:$0xff]
    %v198 = vld [vmem:[%s194 + $0x18] sm:$0xff]
    %v199 = vld [vmem:[%s194 + $0x20] sm:$0xff]
    %v200 = vld [vmem:[%s194 + $0x28] sm:$0xff]
    %v201 = vld [vmem:[%s194 + $0x30] sm:$0xff]
    %v202 = vld [vmem:[%s194 + $0x38] sm:$0xff]
    %211 = vrot.lane.b32.xlu0 %v195, 8
    %v212 = vpop.permute.xlu0 %211
    %213 = vrot.lane.b32.xlu0 %v196, 8
    %v214 = vpop.permute.xlu0 %213
    %215 = vrot.lane.b32.xlu0 %v197, 8
    %v216 = vpop.permute.xlu0 %215
    %217 = vrot.lane.b32.xlu0 %v198, 8
    %v218 = vpop.permute.xlu0 %217
    %219 = vrot.lane.b32.xlu0 %v199, 8
    %v220 = vpop.permute.xlu0 %219
    %221 = vrot.lane.b32.xlu0 %v200, 8
    %v222 = vpop.permute.xlu0 %221
    %223 = vrot.lane.b32.xlu0 %v201, 8
    %v224 = vpop.permute.xlu0 %223
    %225 = vrot.lane.b32.xlu0 %v202, 8
    %v226 = vpop.permute.xlu0 %225
    %vm235 = vcmask 80960
    %236 = vst.msk [vmem:[#allocation2] sm:$0xff] %vm235, %v212
    %237 = vst.msk [vmem:[#allocation2 + $0x8] sm:$0xff] %vm235, %v214
    %238 = vst.msk [vmem:[#allocation2 + $0x10] sm:$0xff] %vm235, %v216
    %239 = vst.msk [vmem:[#allocation2 + $0x18] sm:$0xff] %vm235, %v218
    %240 = vst.msk [vmem:[#allocation2 + $0x20] sm:$0xff] %vm235, %v220
    %241 = vst.msk [vmem:[#allocation2 + $0x28] sm:$0xff] %vm235, %v222
    %242 = vst.msk [vmem:[#allocation2 + $0x30] sm:$0xff] %vm235, %v224
    %243 = vst.msk [vmem:[#allocation2 + $0x38] sm:$0xff] %vm235, %v226
    %v244 = vld [vmem:[#allocation2] sm:$0xff]
    %v245 = vld [vmem:[#allocation2 + $0x8] sm:$0xff]
    %v246 = vld [vmem:[#allocation2 + $0x10] sm:$0xff]
    %v247 = vld [vmem:[#allocation2 + $0x18] sm:$0xff]
    %v248 = vld [vmem:[#allocation2 + $0x20] sm:$0xff]
    %v249 = vld [vmem:[#allocation2 + $0x28] sm:$0xff]
    %v250 = vld [vmem:[#allocation2 + $0x30] sm:$0xff]
    %v251 = vld [vmem:[#allocation2 + $0x38] sm:$0xff]
    %v252 = vld [vmem:[%s1] sm:$0xff]
    %v253 = vld [vmem:[%s1 + $0x8] sm:$0xff]
    %vm254 = vcmask 130048
    %v256 = vsel %vm254, %v244, 0
    %v259 = vsel %vm254, %v245, 0
    %v262 = vsel %vm254, %v246, 0
    %v265 = vsel %vm254, %v247, 0
    %v268 = vsel %vm254, %v248, 0
    %v271 = vsel %vm254, %v249, 0
    %v274 = vsel %vm254, %v250, 0
    %v277 = vsel %vm254, %v251, 0
    %279 = vmatprep.subr.mxu0 0.0
    %280 = vmatpush1.msra.mxu0 %v252
    %281 = vmatprep.subr.mxu0 0.0
    %282 = vmatpush1.msra.mxu0 %v253
    %283 = vmatprep.subr.mxu0 0.0
    %284 = vmatpush1.msra.mxu0 0.0
    %285 = vmatprep.subr.mxu0 0.0
    %286 = vmatpush1.msra.mxu0 0.0
    %287 = vmatprep.subr.mxu0 0.0
    %288 = vmatpush1.msra.mxu0 0.0
    %289 = vmatprep.subr.mxu0 0.0
    %290 = vmatpush1.msra.mxu0 0.0
    %291 = vmatprep.subr.mxu0 0.0
    %292 = vmatpush1.msra.mxu0 0.0
    %293 = vmatprep.subr.mxu0 0.0
    %294 = vmatpush1.msra.mxu0 0.0
    %295 = vmatprep.subr.mxu0 0.0
    %296 = vmatpush1.msra.mxu0 0.0
    %297 = vmatprep.subr.mxu0 0.0
    %298 = vmatpush1.msra.mxu0 0.0
    %299 = vmatprep.subr.mxu0 0.0
    %300 = vmatpush1.msra.mxu0 0.0
    %301 = vmatprep.subr.mxu0 0.0
    %302 = vmatpush1.msra.mxu0 0.0
    %303 = vmatprep.subr.mxu0 0.0
    %304 = vmatpush1.msra.mxu0 0.0
    %305 = vmatprep.subr.mxu0 0.0
    %306 = vmatpush1.msra.mxu0 0.0
    %307 = vmatprep.subr.mxu0 0.0
    %308 = vmatpush1.msra.mxu0 0.0
    %309 = vmatprep.subr.mxu0 0.0
    %310 = vmatpush1.msra.mxu0 0.0
    %311 = vmatprep.subr.mxu0 0.0
    %312 = vmatpush1.msra.mxu0 0.0
    %313 = vmatprep.subr.mxu0 0.0
    %314 = vmatpush1.msra.mxu0 0.0
    %315 = vmatprep.subr.mxu0 0.0
    %316 = vmatpush1.msra.mxu0 0.0
    %317 = vmatprep.subr.mxu0 0.0
    %318 = vmatpush1.msra.mxu0 0.0
    %319 = vmatprep.subr.mxu0 0.0
    %320 = vmatpush1.msra.mxu0 0.0
    %321 = vmatprep.subr.mxu0 0.0
    %322 = vmatpush1.msra.mxu0 0.0
    %323 = vmatprep.subr.mxu0 0.0
    %324 = vmatpush1.msra.mxu0 0.0
    %325 = vmatprep.subr.mxu0 0.0
    %326 = vmatpush1.msra.mxu0 0.0
    %327 = vmatprep.subr.mxu0 0.0
    %328 = vmatpush1.msra.mxu0 0.0
    %329 = vmatprep.subr.mxu0 0.0
    %330 = vmatpush1.msra.mxu0 0.0
    %331 = vmatprep.subr.mxu0 0.0
    %332 = vmatpush1.msra.mxu0 0.0
    %333 = vmatprep.subr.mxu0 0.0
    %334 = vmatpush1.msra.mxu0 0.0
    %335 = vmatprep.subr.mxu0 0.0
    %336 = vmatpush1.msra.mxu0 0.0
    %337 = vmatprep.subr.mxu0 0.0
    %338 = vmatpush1.msra.mxu0 0.0
    %339 = vmatprep.subr.mxu0 0.0
    %340 = vmatpush1.msra.mxu0 0.0
    %341 = vmatprep.subr.mxu0 0.0
    %342 = vmatpush1.msra.mxu0 0.0
    %343 = vmatprep.mubr.f32.mxu0 0.0
    %344 = vmatmul.mubr.f32.gmra.mrb[0].mxu0 %v256
    %v345 = vpop.f32.mrb[0].mxu0
    %v346 = vadd.f32 0.0, %v345
    %v347 = vpop.f32.mrb[0].mxu0
    %348 = vmatprep.mubr.f32.mxu0 0.0
    %349 = vmatmul.mubr.f32.gmra.mrb[0].mxu0 %v259
    %v350 = vpop.f32.mrb[0].mxu0
    %v351 = vadd.f32 0.0, %v350
    %v352 = vpop.f32.mrb[0].mxu0
    %353 = vmatprep.mubr.f32.mxu0 0.0
    %354 = vmatmul.mubr.f32.gmra.mrb[0].mxu0 %v262
    %v355 = vpop.f32.mrb[0].mxu0
    %v356 = vadd.f32 0.0, %v355
    %v357 = vpop.f32.mrb[0].mxu0
    %358 = vmatprep.mubr.f32.mxu0 0.0
    %359 = vmatmul.mubr.f32.gmra.mrb[0].mxu0 %v265
    %v360 = vpop.f32.mrb[0].mxu0
    %v361 = vadd.f32 0.0, %v360
    %v362 = vpop.f32.mrb[0].mxu0
    %363 = vmatprep.mubr.f32.mxu0 0.0
    %364 = vmatmul.mubr.f32.gmra.mrb[0].mxu0 %v268
    %v365 = vpop.f32.mrb[0].mxu0
    %v366 = vadd.f32 0.0, %v365
    %v367 = vpop.f32.mrb[0].mxu0
    %368 = vmatprep.mubr.f32.mxu0 0.0
    %369 = vmatmul.mubr.f32.gmra.mrb[0].mxu0 %v271
    %v370 = vpop.f32.mrb[0].mxu0
    %v371 = vadd.f32 0.0, %v370
    %v372 = vpop.f32.mrb[0].mxu0
    %373 = vmatprep.mubr.f32.mxu0 0.0
    %374 = vmatmul.mubr.f32.gmra.mrb[0].mxu0 %v274
    %v375 = vpop.f32.mrb[0].mxu0
    %v376 = vadd.f32 0.0, %v375
    %v377 = vpop.f32.mrb[0].mxu0
    %378 = vmatprep.mubr.f32.mxu0 0.0
    %379 = vmatmul.mubr.f32.gmra.mrb[0].mxu0 %v277
    %v380 = vpop.f32.mrb[0].mxu0
    %v381 = vadd.f32 0.0, %v380
    %v382 = vpop.f32.mrb[0].mxu0
    %383 = vdwg.mxu0
    %384 = vst [vmem:[#allocation3] sm:$0xff] %v346
    %385 = vst [vmem:[#allocation3 + $0x8] sm:$0xff] %v351
    %386 = vst [vmem:[#allocation3 + $0x10] sm:$0xff] %v356
    %387 = vst [vmem:[#allocation3 + $0x18] sm:$0xff] %v361
    %388 = vst [vmem:[#allocation3 + $0x20] sm:$0xff] %v366
    %389 = vst [vmem:[#allocation3 + $0x28] sm:$0xff] %v371
    %390 = vst [vmem:[#allocation3 + $0x30] sm:$0xff] %v376
    %391 = vst [vmem:[#allocation3 + $0x38] sm:$0xff] %v381
    %s392 = sadd.s32 %s12, 72
    %s393 = scalar_lea.vmem %s0, %s392
    %v394 = vld [vmem:[%s393] sm:$0xff]
    %v395 = vld [vmem:[%s393 + $0x8] sm:$0xff]
    %v396 = vld [vmem:[%s393 + $0x10] sm:$0xff]
    %v397 = vld [vmem:[%s393 + $0x18] sm:$0xff]
    %v398 = vld [vmem:[%s393 + $0x20] sm:$0xff]
    %v399 = vld [vmem:[%s393 + $0x28] sm:$0xff]
    %v400 = vld [vmem:[%s393 + $0x30] sm:$0xff]
    %v401 = vld [vmem:[%s393 + $0x38] sm:$0xff]
    %402 = vst.msk [vmem:[#allocation2] sm:$0xff] %vm31, %v394
    %403 = vst.msk [vmem:[#allocation2 + $0x8] sm:$0xff] %vm31, %v395
    %404 = vst.msk [vmem:[#allocation2 + $0x10] sm:$0xff] %vm31, %v396
    %405 = vst.msk [vmem:[#allocation2 + $0x18] sm:$0xff] %vm31, %v397
    %406 = vst.msk [vmem:[#allocation2 + $0x20] sm:$0xff] %vm31, %v398
    %407 = vst.msk [vmem:[#allocation2 + $0x28] sm:$0xff] %vm31, %v399
    %408 = vst.msk [vmem:[#allocation2 + $0x30] sm:$0xff] %vm31, %v400
    %409 = vst.msk [vmem:[#allocation2 + $0x38] sm:$0xff] %vm31, %v401
    %s410 = sadd.s32 %s40, 72
    %s411 = scalar_lea.vmem %s0, %s410
    %v412 = vld [vmem:[%s411] sm:$0xff]
    %v413 = vld [vmem:[%s411 + $0x8] sm:$0xff]
    %v414 = vld [vmem:[%s411 + $0x10] sm:$0xff]
    %v415 = vld [vmem:[%s411 + $0x18] sm:$0xff]
    %v416 = vld [vmem:[%s411 + $0x20] sm:$0xff]
    %v417 = vld [vmem:[%s411 + $0x28] sm:$0xff]
    %v418 = vld [vmem:[%s411 + $0x30] sm:$0xff]
    %v419 = vld [vmem:[%s411 + $0x38] sm:$0xff]
    %428 = vrot.lane.b32.xlu0 %v412, 2
    %v429 = vpop.permute.xlu0 %428
    %430 = vrot.lane.b32.xlu0 %v413, 2
    %v431 = vpop.permute.xlu0 %430
    %432 = vrot.lane.b32.xlu0 %v414, 2
    %v433 = vpop.permute.xlu0 %432
    %434 = vrot.lane.b32.xlu0 %v415, 2
    %v435 = vpop.permute.xlu0 %434
    %436 = vrot.lane.b32.xlu0 %v416, 2
    %v437 = vpop.permute.xlu0 %436
    %438 = vrot.lane.b32.xlu0 %v417, 2
    %v439 = vpop.permute.xlu0 %438
    %440 = vrot.lane.b32.xlu0 %v418, 2
    %v441 = vpop.permute.xlu0 %440
    %442 = vrot.lane.b32.xlu0 %v419, 2
    %v443 = vpop.permute.xlu0 %442
    %452 = vst.msk [vmem:[#allocation2] sm:$0xff] %vm82, %v429
    %453 = vst.msk [vmem:[#allocation2 + $0x8] sm:$0xff] %vm82, %v431
    %454 = vst.msk [vmem:[#allocation2 + $0x10] sm:$0xff] %vm82, %v433
    %455 = vst.msk [vmem:[#allocation2 + $0x18] sm:$0xff] %vm82, %v435
    %456 = vst.msk [vmem:[#allocation2 + $0x20] sm:$0xff] %vm82, %v437
    %457 = vst.msk [vmem:[#allocation2 + $0x28] sm:$0xff] %vm82, %v439
    %458 = vst.msk [vmem:[#allocation2 + $0x30] sm:$0xff] %vm82, %v441
    %459 = vst.msk [vmem:[#allocation2 + $0x38] sm:$0xff] %vm82, %v443
    %s460 = sadd.s32 %s91, 72
    %s461 = scalar_lea.vmem %s0, %s460
    %v462 = vld [vmem:[%s461] sm:$0xff]
    %v463 = vld [vmem:[%s461 + $0x8] sm:$0xff]
    %v464 = vld [vmem:[%s461 + $0x10] sm:$0xff]
    %v465 = vld [vmem:[%s461 + $0x18] sm:$0xff]
    %v466 = vld [vmem:[%s461 + $0x20] sm:$0xff]
    %v467 = vld [vmem:[%s461 + $0x28] sm:$0xff]
    %v468 = vld [vmem:[%s461 + $0x30] sm:$0xff]
    %v469 = vld [vmem:[%s461 + $0x38] sm:$0xff]
    %478 = vrot.lane.b32.xlu0 %v462, 4
    %v479 = vpop.permute.xlu0 %478
    %480 = vrot.lane.b32.xlu0 %v463, 4
    %v481 = vpop.permute.xlu0 %480
    %482 = vrot.lane.b32.xlu0 %v464, 4
    %v483 = vpop.permute.xlu0 %482
    %484 = vrot.lane.b32.xlu0 %v465, 4
    %v485 = vpop.permute.xlu0 %484
    %486 = vrot.lane.b32.xlu0 %v466, 4
    %v487 = vpop.permute.xlu0 %486
    %488 = vrot.lane.b32.xlu0 %v467, 4
    %v489 = vpop.permute.xlu0 %488
    %490 = vrot.lane.b32.xlu0 %v468, 4
    %v491 = vpop.permute.xlu0 %490
    %492 = vrot.lane.b32.xlu0 %v469, 4
    %v493 = vpop.permute.xlu0 %492
    %502 = vst.msk [vmem:[#allocation2] sm:$0xff] %vm133, %v479
    %503 = vst.msk [vmem:[#allocation2 + $0x8] sm:$0xff] %vm133, %v481
    %504 = vst.msk [vmem:[#allocation2 + $0x10] sm:$0xff] %vm133, %v483
    %505 = vst.msk [vmem:[#allocation2 + $0x18] sm:$0xff] %vm133, %v485
    %506 = vst.msk [vmem:[#allocation2 + $0x20] sm:$0xff] %vm133, %v487
    %507 = vst.msk [vmem:[#allocation2 + $0x28] sm:$0xff] %vm133, %v489
    %508 = vst.msk [vmem:[#allocation2 + $0x30] sm:$0xff] %vm133, %v491
    %509 = vst.msk [vmem:[#allocation2 + $0x38] sm:$0xff] %vm133, %v493
    %s510 = sadd.s32 %s142, 72
    %s511 = scalar_lea.vmem %s0, %s510
    %v512 = vld [vmem:[%s511] sm:$0xff]
    %v513 = vld [vmem:[%s511 + $0x8] sm:$0xff]
    %v514 = vld [vmem:[%s511 + $0x10] sm:$0xff]
    %v515 = vld [vmem:[%s511 + $0x18] sm:$0xff]
    %v516 = vld [vmem:[%s511 + $0x20] sm:$0xff]
    %v517 = vld [vmem:[%s511 + $0x28] sm:$0xff]
    %v518 = vld [vmem:[%s511 + $0x30] sm:$0xff]
    %v519 = vld [vmem:[%s511 + $0x38] sm:$0xff]
    %528 = vrot.lane.b32.xlu0 %v512, 6
    %v529 = vpop.permute.xlu0 %528
    %530 = vrot.lane.b32.xlu0 %v513, 6
    %v531 = vpop.permute.xlu0 %530
    %532 = vrot.lane.b32.xlu0 %v514, 6
    %v533 = vpop.permute.xlu0 %532
    %534 = vrot.lane.b32.xlu0 %v515, 6
    %v535 = vpop.permute.xlu0 %534
    %536 = vrot.lane.b32.xlu0 %v516, 6
    %v537 = vpop.permute.xlu0 %536
    %538 = vrot.lane.b32.xlu0 %v517, 6
    %v539 = vpop.permute.xlu0 %538
    %540 = vrot.lane.b32.xlu0 %v518, 6
    %v541 = vpop.permute.xlu0 %540
    %542 = vrot.lane.b32.xlu0 %v519, 6
    %v543 = vpop.permute.xlu0 %542
    %552 = vst.msk [vmem:[#allocation2] sm:$0xff] %vm184, %v529
    %553 = vst.msk [vmem:[#allocation2 + $0x8] sm:$0xff] %vm184, %v531
    %554 = vst.msk [vmem:[#allocation2 + $0x10] sm:$0xff] %vm184, %v533
    %555 = vst.msk [vmem:[#allocation2 + $0x18] sm:$0xff] %vm184, %v535
    %556 = vst.msk [vmem:[#allocation2 + $0x20] sm:$0xff] %vm184, %v537
    %557 = vst.msk [vmem:[#allocation2 + $0x28] sm:$0xff] %vm184, %v539
    %558 = vst.msk [vmem:[#allocation2 + $0x30] sm:$0xff] %vm184, %v541
    %559 = vst.msk [vmem:[#allocation2 + $0x38] sm:$0xff] %vm184, %v543
    %s560 = sadd.s32 %s193, 72
    %s561 = scalar_lea.vmem %s0, %s560
    %v562 = vld [vmem:[%s561] sm:$0xff]
    %v563 = vld [vmem:[%s561 + $0x8] sm:$0xff]
    %v564 = vld [vmem:[%s561 + $0x10] sm:$0xff]
    %v565 = vld [vmem:[%s561 + $0x18] sm:$0xff]
    %v566 = vld [vmem:[%s561 + $0x20] sm:$0xff]
    %v567 = vld [vmem:[%s561 + $0x28] sm:$0xff]
    %v568 = vld [vmem:[%s561 + $0x30] sm:$0xff]
    %v569 = vld [vmem:[%s561 + $0x38] sm:$0xff]
    %578 = vrot.lane.b32.xlu0 %v562, 8
    %v579 = vpop.permute.xlu0 %578
    %580 = vrot.lane.b32.xlu0 %v563, 8
    %v581 = vpop.permute.xlu0 %580
    %582 = vrot.lane.b32.xlu0 %v564, 8
    %v583 = vpop.permute.xlu0 %582
    %584 = vrot.lane.b32.xlu0 %v565, 8
    %v585 = vpop.permute.xlu0 %584
    %586 = vrot.lane.b32.xlu0 %v566, 8
    %v587 = vpop.permute.xlu0 %586
    %588 = vrot.lane.b32.xlu0 %v567, 8
    %v589 = vpop.permute.xlu0 %588
    %590 = vrot.lane.b32.xlu0 %v568, 8
    %v591 = vpop.permute.xlu0 %590
    %592 = vrot.lane.b32.xlu0 %v569, 8
    %v593 = vpop.permute.xlu0 %592
    %602 = vst.msk [vmem:[#allocation2] sm:$0xff] %vm235, %v579
    %603 = vst.msk [vmem:[#allocation2 + $0x8] sm:$0xff] %vm235, %v581
    %604 = vst.msk [vmem:[#allocation2 + $0x10] sm:$0xff] %vm235, %v583
    %605 = vst.msk [vmem:[#allocation2 + $0x18] sm:$0xff] %vm235, %v585
    %606 = vst.msk [vmem:[#allocation2 + $0x20] sm:$0xff] %vm235, %v587
    %607 = vst.msk [vmem:[#allocation2 + $0x28] sm:$0xff] %vm235, %v589
    %608 = vst.msk [vmem:[#allocation2 + $0x30] sm:$0xff] %vm235, %v591
    %609 = vst.msk [vmem:[#allocation2 + $0x38] sm:$0xff] %vm235, %v593
    %v610 = vld [vmem:[#allocation2] sm:$0xff]
    %v611 = vld [vmem:[#allocation2 + $0x8] sm:$0xff]
    %v612 = vld [vmem:[#allocation2 + $0x10] sm:$0xff]
    %v613 = vld [vmem:[#allocation2 + $0x18] sm:$0xff]
    %v614 = vld [vmem:[#allocation2 + $0x20] sm:$0xff]
    %v615 = vld [vmem:[#allocation2 + $0x28] sm:$0xff]
    %v616 = vld [vmem:[#allocation2 + $0x30] sm:$0xff]
    %v617 = vld [vmem:[#allocation2 + $0x38] sm:$0xff]
    %v618 = vld [vmem:[%s1] sm:$0xff]
    %v619 = vld [vmem:[%s1 + $0x8] sm:$0xff]
    %v621 = vsel %vm254, %v610, 0
    %v624 = vsel %vm254, %v611, 0
    %v627 = vsel %vm254, %v612, 0
    %v630 = vsel %vm254, %v613, 0
    %v633 = vsel %vm254, %v614, 0
    %v636 = vsel %vm254, %v615, 0
    %v639 = vsel %vm254, %v616, 0
    %v642 = vsel %vm254, %v617, 0
    %644 = vmatprep.subr.mxu0 0.0
    %645 = vmatpush1.msra.mxu0 %v618
    %646 = vmatprep.subr.mxu0 0.0
    %647 = vmatpush1.msra.mxu0 %v619
    %648 = vmatprep.subr.mxu0 0.0
    %649 = vmatpush1.msra.mxu0 0.0
    %650 = vmatprep.subr.mxu0 0.0
    %651 = vmatpush1.msra.mxu0 0.0
    %652 = vmatprep.subr.mxu0 0.0
    %653 = vmatpush1.msra.mxu0 0.0
    %654 = vmatprep.subr.mxu0 0.0
    %655 = vmatpush1.msra.mxu0 0.0
    %656 = vmatprep.subr.mxu0 0.0
    %657 = vmatpush1.msra.mxu0 0.0
    %658 = vmatprep.subr.mxu0 0.0
    %659 = vmatpush1.msra.mxu0 0.0
    %660 = vmatprep.subr.mxu0 0.0
    %661 = vmatpush1.msra.mxu0 0.0
    %662 = vmatprep.subr.mxu0 0.0
    %663 = vmatpush1.msra.mxu0 0.0
    %664 = vmatprep.subr.mxu0 0.0
    %665 = vmatpush1.msra.mxu0 0.0
    %666 = vmatprep.subr.mxu0 0.0
    %667 = vmatpush1.msra.mxu0 0.0
    %668 = vmatprep.subr.mxu0 0.0
    %669 = vmatpush1.msra.mxu0 0.0
    %670 = vmatprep.subr.mxu0 0.0
    %671 = vmatpush1.msra.mxu0 0.0
    %672 = vmatprep.subr.mxu0 0.0
    %673 = vmatpush1.msra.mxu0 0.0
    %674 = vmatprep.subr.mxu0 0.0
    %675 = vmatpush1.msra.mxu0 0.0
    %676 = vmatprep.subr.mxu0 0.0
    %677 = vmatpush1.msra.mxu0 0.0
    %678 = vmatprep.subr.mxu0 0.0
    %679 = vmatpush1.msra.mxu0 0.0
    %680 = vmatprep.subr.mxu0 0.0
    %681 = vmatpush1.msra.mxu0 0.0
    %682 = vmatprep.subr.mxu0 0.0
    %683 = vmatpush1.msra.mxu0 0.0
    %684 = vmatprep.subr.mxu0 0.0
    %685 = vmatpush1.msra.mxu0 0.0
    %686 = vmatprep.subr.mxu0 0.0
    %687 = vmatpush1.msra.mxu0 0.0
    %688 = vmatprep.subr.mxu0 0.0
    %689 = vmatpush1.msra.mxu0 0.0
    %690 = vmatprep.subr.mxu0 0.0
    %691 = vmatpush1.msra.mxu0 0.0
    %692 = vmatprep.subr.mxu0 0.0
    %693 = vmatpush1.msra.mxu0 0.0
    %694 = vmatprep.subr.mxu0 0.0
    %695 = vmatpush1.msra.mxu0 0.0
    %696 = vmatprep.subr.mxu0 0.0
    %697 = vmatpush1.msra.mxu0 0.0
    %698 = vmatprep.subr.mxu0 0.0
    %699 = vmatpush1.msra.mxu0 0.0
    %700 = vmatprep.subr.mxu0 0.0
    %701 = vmatpush1.msra.mxu0 0.0
    %702 = vmatprep.subr.mxu0 0.0
    %703 = vmatpush1.msra.mxu0 0.0
    %704 = vmatprep.subr.mxu0 0.0
    %705 = vmatpush1.msra.mxu0 0.0
    %706 = vmatprep.subr.mxu0 0.0
    %707 = vmatpush1.msra.mxu0 0.0
    %708 = vmatprep.mubr.f32.mxu0 0.0
    %709 = vmatmul.mubr.f32.gmra.mrb[0].mxu0 %v621
    %v710 = vpop.f32.mrb[0].mxu0
    %v711 = vadd.f32 0.0, %v710
    %v712 = vpop.f32.mrb[0].mxu0
    %713 = vmatprep.mubr.f32.mxu0 0.0
    %714 = vmatmul.mubr.f32.gmra.mrb[0].mxu0 %v624
    %v715 = vpop.f32.mrb[0].mxu0
    %v716 = vadd.f32 0.0, %v715
    %v717 = vpop.f32.mrb[0].mxu0
    %718 = vmatprep.mubr.f32.mxu0 0.0
    %719 = vmatmul.mubr.f32.gmra.mrb[0].mxu0 %v627
    %v720 = vpop.f32.mrb[0].mxu0
    %v721 = vadd.f32 0.0, %v720
    %v722 = vpop.f32.mrb[0].mxu0
    %723 = vmatprep.mubr.f32.mxu0 0.0
    %724 = vmatmul.mubr.f32.gmra.mrb[0].mxu0 %v630
    %v725 = vpop.f32.mrb[0].mxu0
    %v726 = vadd.f32 0.0, %v725
    %v727 = vpop.f32.mrb[0].mxu0
    %728 = vmatprep.mubr.f32.mxu0 0.0
    %729 = vmatmul.mubr.f32.gmra.mrb[0].mxu0 %v633
    %v730 = vpop.f32.mrb[0].mxu0
    %v731 = vadd.f32 0.0, %v730
    %v732 = vpop.f32.mrb[0].mxu0
    %733 = vmatprep.mubr.f32.mxu0 0.0
    %734 = vmatmul.mubr.f32.gmra.mrb[0].mxu0 %v636
    %v735 = vpop.f32.mrb[0].mxu0
    %v736 = vadd.f32 0.0, %v735
    %v737 = vpop.f32.mrb[0].mxu0
    %738 = vmatprep.mubr.f32.mxu0 0.0
    %739 = vmatmul.mubr.f32.gmra.mrb[0].mxu0 %v639
    %v740 = vpop.f32.mrb[0].mxu0
    %v741 = vadd.f32 0.0, %v740
    %v742 = vpop.f32.mrb[0].mxu0
    %743 = vmatprep.mubr.f32.mxu0 0.0
    %744 = vmatmul.mubr.f32.gmra.mrb[0].mxu0 %v642
    %v745 = vpop.f32.mrb[0].mxu0
    %v746 = vadd.f32 0.0, %v745
    %v747 = vpop.f32.mrb[0].mxu0
    %748 = vdwg.mxu0
    %s749 = scalar_lea.vmem [#allocation3], 64
    %750 = vst [vmem:[%s749] sm:$0xff] %v711
    %751 = vst [vmem:[%s749 + $0x8] sm:$0xff] %v716
    %752 = vst [vmem:[%s749 + $0x10] sm:$0xff] %v721
    %753 = vst [vmem:[%s749 + $0x18] sm:$0xff] %v726
    %754 = vst [vmem:[%s749 + $0x20] sm:$0xff] %v731
    %755 = vst [vmem:[%s749 + $0x28] sm:$0xff] %v736
    %756 = vst [vmem:[%s749 + $0x30] sm:$0xff] %v741
    %757 = vst [vmem:[%s749 + $0x38] sm:$0xff] %v746
    // Predicated region
    $region10: #{tpu_custom_call.1} parent=1 // pred_check
      _
    $region11: #{tpu_custom_call.1} parent=1 // pred_check_branch
      %759 = sbr.rel (0) target = $region13
    $region12: #{tpu_custom_call.1} parent=1 // pred_region
      %s761 = ssub.s32 2048, 2048
      %762 = vsyncadd [#allocation4], %s761
      %s763 = sshll.u32 [#allocation3], 4
      %s764 = int_to_ptr.vmem [resolvable:$true] %s763
      %769 = dma.vmem_to_hbm [thread:$0]  %s764, 2048, %s2, [#allocation4], 128, 128, 8
    $region13: #{tpu_custom_call.1} parent=1 // pred_fallthru
      _
    // Predicated region
    $region14: #{tpu_custom_call.1} parent=1 // pred_check
      _
    $region15: #{tpu_custom_call.1} parent=1 // pred_check_branch
      %771 = sbr.rel (0) target = $region17
    $region16: #{tpu_custom_call.1} parent=1 // pred_region
      %772 = dma.done [#allocation4], 2048
    $region17: #{tpu_custom_call.1} parent=1 // pred_fallthru
      _
    %773 = vsyncpa [#allocation4], 1

</llo_original>
